<compile_context>
chip_gen: v6e
topology: v6e:2x2x1
jax: 0.10.0
libtpu: 0.0.40
codegen_flags: <defaults>
</compile_context>

<pallas_src>
import jax
import jax.numpy as jnp
from jax import lax
from jax.experimental import pallas as pl
from jax.experimental.pallas import tpu as pltpu


def _attention_kernel(seq_ref, w_ref, b_ref, v_ref, out_ref, attn_ref):
    # seq_ref : (B, S, H)  batch of independent sequences (whole array, VMEM)
    # w_ref   : (H, H)     PyTorch nn.Linear weight, [out, in]
    # b_ref   : (1, H)     bias
    # v_ref   : (1, H)     attention vector
    # out_ref : (B, H)
    # attn_ref: (B, S)
    B, S, H = seq_ref.shape
    x = seq_ref[...].astype(jnp.float32)                       # (B, S, H)

    # One fused MXU matmul over all B*S rows: act = tanh(x @ W.T + b).
    # Contract x's last dim with W's *input* dim (no transpose of W needed).
    x2 = x.reshape(B * S, H)
    act = jnp.tanh(
        lax.dot_general(x2, w_ref[...].astype(jnp.float32),
                        (((1,), (1,)), ((), ())),
                        preferred_element_type=jnp.float32)
        + b_ref[...].astype(jnp.float32)                        # (1, H) bcast
    ).reshape(B, S, H)                                          # (B, S, H)

    # scores[b, s] = sum_h act[b, s, h] * v[h]  -- VPU mul + lane reduce
    # (a K=32 matvec per sequence would waste the MXU).
    scores = jnp.sum(act * v_ref[...].astype(jnp.float32), axis=-1)   # (B, S)

    # softmax over the sequence axis (exact divide: weights sum to 1).
    m = jnp.max(scores, axis=-1, keepdims=True)
    e = jnp.exp(scores - m)
    p = e / jnp.sum(e, axis=-1, keepdims=True)                  # (B, S)
    attn_ref[...] = p.astype(attn_ref.dtype)

    # out[b, :] = sum_s p[b, s] * x[b, s, :]  -- VPU mul + sublane reduce.
    out_ref[...] = jnp.sum(x * p[:, :, None], axis=1).astype(out_ref.dtype)


def attention_forward(sequence, linear_w, linear_b, attn_vec):
    """Batched Attention forward.

    sequence: [B, S, H]   batch of independent sequences
    linear_w: [H, H]      PyTorch nn.Linear weight ([out, in])
    linear_b: [H]
    attn_vec: [H]
    Returns (out [B, H], attention_weights [B, S]).
    """
    B, S, H = sequence.shape
    b2 = linear_b.reshape(1, H)
    v2 = attn_vec.reshape(1, H)

    # Advisory cost estimate: flops ~ 2*S*H^2 + 4*S*H per item.
    flops = B * (2 * S * H * H + 4 * S * H)
    transcendentals = B * (S * H + S)                 # tanh + exp
    bytes_accessed = 4 * (B * (S * H + H + S) + H * H + 2 * H)

    out, attn = pl.pallas_call(
        _attention_kernel,
        out_shape=(
            jax.ShapeDtypeStruct((B, H), jnp.float32),
            jax.ShapeDtypeStruct((B, S), jnp.float32),
        ),
        # No grid / BlockSpecs: whole arrays live in VMEM for the single step.
        cost_estimate=pl.CostEstimate(
            flops=flops,
            transcendentals=transcendentals,
            bytes_accessed=bytes_accessed,
        ),
    )(sequence, linear_w, b2, v2)

    return out, attn


def _reference(sequence, linear_w, linear_b, attn_vec):
    # Per-sequence PyTorch semantics: softmax over the sequence axis.
    act = jnp.tanh(jnp.einsum("bsh,oh->bso", sequence, linear_w) + linear_b)
    scores = jnp.einsum("bso,o->bs", act, attn_vec)
    p = jax.nn.softmax(scores, axis=-1)
    out = jnp.einsum("bs,bsh->bh", p, sequence)
    return out, p


if __name__ == "__main__":
    B, S, H = 16, 8, 32  # batch of 16 sequences, seq=8, hidden=32

    key = jax.random.PRNGKey(0)
    k_seq, k_w, k_b, k_v = jax.random.split(key, 4)

    sequence = jax.random.normal(k_seq, (B, S, H), dtype=jnp.float32)

    # Deterministic parameter init matching the PyTorch module shapes.
    # nn.Linear(size, size): weight [H, H] ([out, in]), bias [H].
    linear_w = jax.random.normal(k_w, (H, H), dtype=jnp.float32) * (1.0 / jnp.sqrt(H))
    linear_b = jax.random.normal(k_b, (H,), dtype=jnp.float32) * 0.01
    # xavier_normal_ on a [1, H] tensor -> std = sqrt(2 / (1 + H)), then squeeze.
    attn_vec = jax.random.normal(k_v, (H,), dtype=jnp.float32) * jnp.sqrt(2.0 / (1.0 + H))

    out, attn_w = attention_forward(sequence, linear_w, linear_b, attn_vec)
    jax.block_until_ready((out, attn_w))

    ref_out, ref_attn = _reference(sequence, linear_w, linear_b, attn_vec)
    assert out.shape == (B, H) and attn_w.shape == (B, S)
    assert jnp.allclose(out, ref_out, atol=1e-3, rtol=1e-3), "out mismatch"
    assert jnp.allclose(attn_w, ref_attn, atol=1e-3, rtol=1e-3), "attn mismatch"

    print("KERNEL_OK")
</pallas_src>

<mosaic_0001>
module attributes {stable_mosaic.version = 11 : i64} {
  func.func @_attention_kernel(%arg0: memref<16x8x32xf32, #tpu.memory_space<vmem>>, %arg1: memref<32x32xf32, #tpu.memory_space<vmem>>, %arg2: memref<1x32xf32, #tpu.memory_space<vmem>>, %arg3: memref<1x32xf32, #tpu.memory_space<vmem>>, %arg4: memref<16x32xf32, #tpu.memory_space<vmem>>, %arg5: memref<16x8xf32, #tpu.memory_space<vmem>>) attributes {dimension_semantics = [], scalar_prefetch = 0 : i64, scratch_operands = 0 : i64, tpu.core_type = #tpu.core_type<tc>} {
    %c0 = arith.constant 0 : index
    %c0_0 = arith.constant 0 : index
    %c0_1 = arith.constant 0 : index
    %0 = vector.load %arg0[%c0, %c0_0, %c0_1] : memref<16x8x32xf32, #tpu.memory_space<vmem>>, vector<16x8x32xf32>
    %1 = vector.shape_cast %0 : vector<16x8x32xf32> to vector<128x32xf32>
    %c0_2 = arith.constant 0 : index
    %c0_3 = arith.constant 0 : index
    %2 = vector.load %arg1[%c0_2, %c0_3] : memref<32x32xf32, #tpu.memory_space<vmem>>, vector<32x32xf32>
    %cst = arith.constant dense<0.000000e+00> : vector<128x32xf32>
    %3 = tpu.matmul %1, %2, %cst {dimension_numbers = #tpu.dot_dimension_numbers<[1], [1], [0], [0], [0, 0, 1, 0], [], []>} : vector<128x32xf32>, vector<32x32xf32>, vector<128x32xf32> -> vector<128x32xf32>
    %c0_4 = arith.constant 0 : index
    %c0_5 = arith.constant 0 : index
    %4 = vector.load %arg2[%c0_4, %c0_5] : memref<1x32xf32, #tpu.memory_space<vmem>>, vector<1x32xf32>
    %5 = vector.broadcast %4 : vector<1x32xf32> to vector<128x32xf32>
    %6 = arith.addf %3, %5 : vector<128x32xf32>
    %7 = math.tanh %6 : vector<128x32xf32>
    %8 = vector.shape_cast %7 : vector<128x32xf32> to vector<16x8x32xf32>
    %c0_6 = arith.constant 0 : index
    %c0_7 = arith.constant 0 : index
    %9 = vector.load %arg3[%c0_6, %c0_7] : memref<1x32xf32, #tpu.memory_space<vmem>>, vector<1x32xf32>
    %10 = vector.shape_cast %9 : vector<1x32xf32> to vector<1x1x32xf32>
    %11 = vector.broadcast %10 : vector<1x1x32xf32> to vector<16x8x32xf32>
    %12 = arith.mulf %8, %11 : vector<16x8x32xf32>
    %cst_8 = arith.constant dense<0.000000e+00> : vector<16x8xf32>
    %13 = vector.multi_reduction <add>, %12, %cst_8 [2] : vector<16x8x32xf32> to vector<16x8xf32>
    %cst_9 = arith.constant dense<0xFF800000> : vector<16xf32>
    %14 = vector.multi_reduction <maximumf>, %13, %cst_9 [1] : vector<16x8xf32> to vector<16xf32>
    %15 = vector.shape_cast %14 : vector<16xf32> to vector<16x1xf32>
    %16 = vector.broadcast %15 : vector<16x1xf32> to vector<16x8xf32>
    %17 = arith.subf %13, %16 : vector<16x8xf32>
    %18 = math.exp %17 : vector<16x8xf32>
    %cst_10 = arith.constant dense<0.000000e+00> : vector<16xf32>
    %19 = vector.multi_reduction <add>, %18, %cst_10 [1] : vector<16x8xf32> to vector<16xf32>
    %20 = vector.shape_cast %19 : vector<16xf32> to vector<16x1xf32>
    %21 = vector.broadcast %20 : vector<16x1xf32> to vector<16x8xf32>
    %22 = arith.divf %18, %21 : vector<16x8xf32>
    %c0_11 = arith.constant 0 : index
    %c0_12 = arith.constant 0 : index
    %23 = vector.load %arg5[%c0_11, %c0_12] : memref<16x8xf32, #tpu.memory_space<vmem>>, vector<16x8xf32>
    tpu.vector_store %arg5[%c0_11, %c0_12], %22 {strides = array<i32>} : memref<16x8xf32, #tpu.memory_space<vmem>>, vector<16x8xf32>,
    %24 = vector.shape_cast %22 : vector<16x8xf32> to vector<16x8x1xf32>
    %25 = vector.broadcast %24 : vector<16x8x1xf32> to vector<16x8x32xf32>
    %26 = arith.mulf %0, %25 : vector<16x8x32xf32>
    %cst_13 = arith.constant dense<0.000000e+00> : vector<16x32xf32>
    %27 = vector.multi_reduction <add>, %26, %cst_13 [1] : vector<16x8x32xf32> to vector<16x32xf32>
    %c0_14 = arith.constant 0 : index
    %c0_15 = arith.constant 0 : index
    %28 = vector.load %arg4[%c0_14, %c0_15] : memref<16x32xf32, #tpu.memory_space<vmem>>, vector<16x32xf32>
    tpu.vector_store %arg4[%c0_14, %c0_15], %27 {strides = array<i32>} : memref<16x32xf32, #tpu.memory_space<vmem>>, vector<16x32xf32>,
    return
  }
}

</mosaic_0001>

<llo_original>
// kernel: tpu_custom_call.1
$region0: #{tpu_custom_call.1}
  #allocation0 [shape = 'u32[]', space=smem, size = 0x4, offset = 0x4, fixed_abs, tag = 'smem constant byte address 0x4 - core index']
  #allocation1 [shape = 'u32[144,128]{1,0:T(1,128)}', space=vmem, size = 0x12000, scoped, tag = 'internal scratch']
  %s0 = inlined_call_operand.hbm [shape: f32[16,8,32], index: 0, kind: input, shape index: {}]
  %s1 = inlined_call_operand.hbm [shape: f32[32,32], index: 1, kind: input, shape index: {}]
  %s2 = inlined_call_operand.vmem [shape: f32[1,32], index: 2, kind: input, shape index: {}]
  %s3 = inlined_call_operand.vmem [shape: f32[1,32], index: 3, kind: input, shape index: {}]
  %s4 = inlined_call_operand.hbm [shape: f32[16,32], index: 4, kind: output, shape index: {0}]
  %s5 = inlined_call_operand.vmem [shape: f32[16,8], index: 5, kind: output, shape index: {1}]
  %6 = xla_tuple %s4, %s5
  %s7 = sld [smem:[#allocation0]]
  $region42: #{tpu_custom_call.1} parent=0
    _
  %s9 = ssub.s32 1, %s7
  %s10 = scalar_select 0, %s9, %s7
  $region1: #{tpu_custom_call.1} parent=0
    #allocation2 [shape = 'u8[65536]{0}', space=vmem, size = 0x10000, scoped, tag = 'input window, operand 0, single buffered']
    #allocation3 [shape = 's32[1]{0}', space=sflag, size = 0x4, scoped, tag = 'scoped memory for tpu_custom_call.1']
    #allocation4 [shape = 's32[1]{0}', space=sflag, size = 0x4, scoped, tag = 'scoped memory for tpu_custom_call.1']
    #allocation5 [shape = 'u8[16384]{0}', space=vmem, size = 0x4000, scoped, tag = 'input window, operand 1, single buffered']
    #allocation6 [shape = 's32[1]{0}', space=sflag, size = 0x4, scoped, tag = 'scoped memory for tpu_custom_call.1']
    #allocation7 [shape = 'u8[8192]{0}', space=vmem, size = 0x2000, scoped, tag = 'output window, operand 0, single buffered']
    %11 = vsyncpa [#allocation3], 0
    %12 = vsyncpa [#allocation6], 0
    %13 = vsyncpa [#allocation4], 0
    // Predicated region
    $region2: #{tpu_custom_call.1} parent=1 // pred_check
      _
    $region3: #{tpu_custom_call.1} parent=1 // pred_check_branch
      %15 = sbr.rel (0) target = $region5
    $region4: #{tpu_custom_call.1} parent=1 // pred_region
      %s17 = ssub.s32 2048, 2048
      %18 = vsyncadd [#allocation3], %s17
      %s19 = sshll.u32 [#allocation2], 4
      %s20 = int_to_ptr.vmem [resolvable:$true] %s19
      %25 = dma.hbm_to_vmem [thread:$0]  %s0, 2048, %s20, [#allocation3], 128, 128, 8
    $region5: #{tpu_custom_call.1} parent=1 // pred_fallthru
      _
    // Predicated region
    $region6: #{tpu_custom_call.1} parent=1 // pred_check
      _
    $region7: #{tpu_custom_call.1} parent=1 // pred_check_branch
      %27 = sbr.rel (0) target = $region9
    $region8: #{tpu_custom_call.1} parent=1 // pred_region
      %s29 = ssub.s32 512, 512
      %30 = vsyncadd [#allocation6], %s29
      %s31 = sshll.u32 [#allocation5], 4
      %s32 = int_to_ptr.vmem [resolvable:$true] %s31
      %37 = dma.hbm_to_vmem [thread:$0]  %s1, 512, %s32, [#allocation6], 128, 128, 8
    $region9: #{tpu_custom_call.1} parent=1 // pred_fallthru
      _
    // Predicated region
    $region10: #{tpu_custom_call.1} parent=1 // pred_check
      _
    $region11: #{tpu_custom_call.1} parent=1 // pred_check_branch
      %39 = sbr.rel (0) target = $region13
    $region12: #{tpu_custom_call.1} parent=1 // pred_region
      _
    $region13: #{tpu_custom_call.1} parent=1 // pred_fallthru
      _
    // Predicated region
    $region14: #{tpu_custom_call.1} parent=1 // pred_check
      _
    $region15: #{tpu_custom_call.1} parent=1 // pred_check_branch
      %41 = sbr.rel (0) target = $region17
    $region16: #{tpu_custom_call.1} parent=1 // pred_region
      _
    $region17: #{tpu_custom_call.1} parent=1 // pred_fallthru
      _
    // Predicated region
    $region18: #{tpu_custom_call.1} parent=1 // pred_check
      _
    $region19: #{tpu_custom_call.1} parent=1 // pred_check_branch
      %43 = sbr.rel (0) target = $region21
    $region20: #{tpu_custom_call.1} parent=1 // pred_region
      %44 = dma.done [#allocation3], 2048
    $region21: #{tpu_custom_call.1} parent=1 // pred_fallthru
      _
    // Predicated region
    $region22: #{tpu_custom_call.1} parent=1 // pred_check
      _
    $region23: #{tpu_custom_call.1} parent=1 // pred_check_branch
      %46 = sbr.rel (0) target = $region25
    $region24: #{tpu_custom_call.1} parent=1 // pred_region
      %47 = dma.done [#allocation6], 512
    $region25: #{tpu_custom_call.1} parent=1 // pred_fallthru
      _
    %v48 = vld [vmem:[#allocation2] sm:$0xff]
    %v49 = vld [vmem:[#allocation2 + $0x8] sm:$0xff]
    %v50 = vld [vmem:[#allocation2 + $0x10] sm:$0xff]
    %v51 = vld [vmem:[#allocation2 + $0x18] sm:$0xff]
    %v52 = vld [vmem:[#allocation2 + $0x20] sm:$0xff]
    %v53 = vld [vmem:[#allocation2 + $0x28] sm:$0xff]
    %v54 = vld [vmem:[#allocation2 + $0x30] sm:$0xff]
    %v55 = vld [vmem:[#allocation2 + $0x38] sm:$0xff]
    %v56 = vld [vmem:[#allocation2 + $0x40] sm:$0xff]
    %v57 = vld [vmem:[#allocation2 + $0x48] sm:$0xff]
    %v58 = vld [vmem:[#allocation2 + $0x50] sm:$0xff]
    %v59 = vld [vmem:[#allocation2 + $0x58] sm:$0xff]
    %v60 = vld [vmem:[#allocation2 + $0x60] sm:$0xff]
    %v61 = vld [vmem:[#allocation2 + $0x68] sm:$0xff]
    %v62 = vld [vmem:[#allocation2 + $0x70] sm:$0xff]
    %v63 = vld [vmem:[#allocation2 + $0x78] sm:$0xff]
    %v64 = vld [vmem:[#allocation5] sm:$0xff]
    %v65 = vld [vmem:[#allocation5 + $0x8] sm:$0xff]
    %v66 = vld [vmem:[#allocation5 + $0x10] sm:$0xff]
    %v67 = vld [vmem:[#allocation5 + $0x18] sm:$0xff]
    %v68 = vld [vmem:[%s2] sm:$0x1]
    %v70 = vlaneseq
    %v71 = vshrl.u32 %v70, 7
    %v72 = vsub.s32 0, %v71
    %v73 = vrot.slane %v68, %v72
    %vm75 = vcmask 261120
    %v77 = vsel %vm75, %v48, 0
    %v80 = vsel %vm75, %v49, 0
    %v83 = vsel %vm75, %v50, 0
    %v86 = vsel %vm75, %v51, 0
    %v89 = vsel %vm75, %v52, 0
    %v92 = vsel %vm75, %v53, 0
    %v95 = vsel %vm75, %v54, 0
    %v98 = vsel %vm75, %v55, 0
    %v101 = vsel %vm75, %v56, 0
    %v104 = vsel %vm75, %v57, 0
    %v107 = vsel %vm75, %v58, 0
    %v110 = vsel %vm75, %v59, 0
    %v113 = vsel %vm75, %v60, 0
    %v116 = vsel %vm75, %v61, 0
    %v119 = vsel %vm75, %v62, 0
    %v122 = vsel %vm75, %v63, 0
    %v125 = vsel %vm75, %v64, 0
    %v128 = vsel %vm75, %v65, 0
    %v131 = vsel %vm75, %v66, 0
    %v134 = vsel %vm75, %v67, 0
    %136 = vmatprep.subr.mxu0 0.0
    %137 = vmatpush1.xpose.msra.mxu0 0.0
    %138 = vmatprep.subr.mxu0 0.0
    %139 = vmatpush1.xpose.msra.mxu0 0.0
    %140 = vmatprep.subr.mxu0 0.0
    %141 = vmatpush1.xpose.msra.mxu0 0.0
    %142 = vmatprep.subr.mxu0 0.0
    %143 = vmatpush1.xpose.msra.mxu0 0.0
    %144 = vmatprep.subr.mxu0 0.0
    %145 = vmatpush1.xpose.msra.mxu0 0.0
    %146 = vmatprep.subr.mxu0 0.0
    %147 = vmatpush1.xpose.msra.mxu0 0.0
    %148 = vmatprep.subr.mxu0 0.0
    %149 = vmatpush1.xpose.msra.mxu0 0.0
    %150 = vmatprep.subr.mxu0 0.0
    %151 = vmatpush1.xpose.msra.mxu0 0.0
    %152 = vmatprep.subr.mxu0 0.0
    %153 = vmatpush1.xpose.msra.mxu0 0.0
    %154 = vmatprep.subr.mxu0 0.0
    %155 = vmatpush1.xpose.msra.mxu0 0.0
    %156 = vmatprep.subr.mxu0 0.0
    %157 = vmatpush1.xpose.msra.mxu0 0.0
    %158 = vmatprep.subr.mxu0 0.0
    %159 = vmatpush1.xpose.msra.mxu0 0.0
    %160 = vmatprep.subr.mxu0 0.0
    %161 = vmatpush1.xpose.msra.mxu0 %v134
    %162 = vmatprep.subr.mxu0 0.0
    %163 = vmatpush1.xpose.msra.mxu0 %v131
    %164 = vmatprep.subr.mxu0 0.0
    %165 = vmatpush1.xpose.msra.mxu0 %v128
    %166 = vmatprep.subr.mxu0 0.0
    %167 = vmatpush1.xpose.msra.mxu0 %v125
    %168 = vmatprep.subr.mxu0 0.0
    %169 = vmatpush2.xpose.msra.mxu0 0.0
    %170 = vmatprep.subr.mxu0 0.0
    %171 = vmatpush2.xpose.msra.mxu0 0.0
    %172 = vmatprep.subr.mxu0 0.0
    %173 = vmatpush2.xpose.msra.mxu0 0.0
    %174 = vmatprep.subr.mxu0 0.0
    %175 = vmatpush2.xpose.msra.mxu0 0.0
    %176 = vmatprep.subr.mxu0 0.0
    %177 = vmatpush2.xpose.msra.mxu0 0.0
    %178 = vmatprep.subr.mxu0 0.0
    %179 = vmatpush2.xpose.msra.mxu0 0.0
    %180 = vmatprep.subr.mxu0 0.0
    %181 = vmatpush2.xpose.msra.mxu0 0.0
    %182 = vmatprep.subr.mxu0 0.0
    %183 = vmatpush2.xpose.msra.mxu0 0.0
    %184 = vmatprep.subr.mxu0 0.0
    %185 = vmatpush2.xpose.msra.mxu0 0.0
    %186 = vmatprep.subr.mxu0 0.0
    %187 = vmatpush2.xpose.msra.mxu0 0.0
    %188 = vmatprep.subr.mxu0 0.0
    %189 = vmatpush2.xpose.msra.mxu0 0.0
    %190 = vmatprep.subr.mxu0 0.0
    %191 = vmatpush2.xpose.msra.mxu0 0.0
    %192 = vmatprep.subr.mxu0 0.0
    %193 = vmatpush2.xpose.msra.mxu0 0.0
    %194 = vmatprep.subr.mxu0 0.0
    %195 = vmatpush2.xpose.msra.mxu0 0.0
    %196 = vmatprep.subr.mxu0 0.0
    %197 = vmatpush2.xpose.msra.mxu0 0.0
    %198 = vmatprep.subr.mxu0 0.0
    %199 = vmatpush2.xpose.msra.mxu0 0.0
    %200 = vmatprep.mubr.f32.mxu0 0.0
    %201 = vmatmul.mubr.f32.gmra.mxu0 %v77
    %v202 = vpop.f32.mrf.mxu0
    %v203 = vadd.f32 %v73, %v202
    %v204 = vpop.f32.mrf.mxu0
    %205 = vmatprep.mubr.f32.mxu0 0.0
    %206 = vmatmul.mubr.f32.gmra.mxu0 %v80
    %v207 = vpop.f32.mrf.mxu0
    %v208 = vadd.f32 %v73, %v207
    %v209 = vpop.f32.mrf.mxu0
    %210 = vmatprep.mubr.f32.mxu0 0.0
    %211 = vmatmul.mubr.f32.gmra.mxu0 %v83
    %v212 = vpop.f32.mrf.mxu0
    %v213 = vadd.f32 %v73, %v212
    %v214 = vpop.f32.mrf.mxu0
    %215 = vmatprep.mubr.f32.mxu0 0.0
    %216 = vmatmul.mubr.f32.gmra.mxu0 %v86
    %v217 = vpop.f32.mrf.mxu0
    %v218 = vadd.f32 %v73, %v217
    %v219 = vpop.f32.mrf.mxu0
    %220 = vmatprep.mubr.f32.mxu0 0.0
    %221 = vmatmul.mubr.f32.gmra.mxu0 %v89
    %v222 = vpop.f32.mrf.mxu0
    %v223 = vadd.f32 %v73, %v222
    %v224 = vpop.f32.mrf.mxu0
    %225 = vmatprep.mubr.f32.mxu0 0.0
    %226 = vmatmul.mubr.f32.gmra.mxu0 %v92
    %v227 = vpop.f32.mrf.mxu0
    %v228 = vadd.f32 %v73, %v227
    %v229 = vpop.f32.mrf.mxu0
    %230 = vmatprep.mubr.f32.mxu0 0.0
    %231 = vmatmul.mubr.f32.gmra.mxu0 %v95
    %v232 = vpop.f32.mrf.mxu0
    %v233 = vadd.f32 %v73, %v232
    %v234 = vpop.f32.mrf.mxu0
    %235 = vmatprep.mubr.f32.mxu0 0.0
    %236 = vmatmul.mubr.f32.gmra.mxu0 %v98
    %v237 = vpop.f32.mrf.mxu0
    %v238 = vadd.f32 %v73, %v237
    %v239 = vpop.f32.mrf.mxu0
    %240 = vmatprep.mubr.f32.mxu0 0.0
    %241 = vmatmul.mubr.f32.gmra.mxu0 %v101
    %v242 = vpop.f32.mrf.mxu0
    %v243 = vadd.f32 %v73, %v242
    %v244 = vpop.f32.mrf.mxu0
    %245 = vmatprep.mubr.f32.mxu0 0.0
    %246 = vmatmul.mubr.f32.gmra.mxu0 %v104
    %v247 = vpop.f32.mrf.mxu0
    %v248 = vadd.f32 %v73, %v247
    %v249 = vpop.f32.mrf.mxu0
    %250 = vmatprep.mubr.f32.mxu0 0.0
    %251 = vmatmul.mubr.f32.gmra.mxu0 %v107
    %v252 = vpop.f32.mrf.mxu0
    %v253 = vadd.f32 %v73, %v252
    %v254 = vpop.f32.mrf.mxu0
    %255 = vmatprep.mubr.f32.mxu0 0.0
    %256 = vmatmul.mubr.f32.gmra.mxu0 %v110
    %v257 = vpop.f32.mrf.mxu0
    %v258 = vadd.f32 %v73, %v257
    %v259 = vpop.f32.mrf.mxu0
    %260 = vmatprep.mubr.f32.mxu0 0.0
    %261 = vmatmul.mubr.f32.gmra.mxu0 %v113
    %v262 = vpop.f32.mrf.mxu0
    %v263 = vadd.f32 %v73, %v262
    %v264 = vpop.f32.mrf.mxu0
    %265 = vmatprep.mubr.f32.mxu0 0.0
    %266 = vmatmul.mubr.f32.gmra.mxu0 %v116
    %v267 = vpop.f32.mrf.mxu0
    %v268 = vadd.f32 %v73, %v267
    %v269 = vpop.f32.mrf.mxu0
    %270 = vmatprep.mubr.f32.mxu0 0.0
    %271 = vmatmul.mubr.f32.gmra.mxu0 %v119
    %v272 = vpop.f32.mrf.mxu0
    %v273 = vadd.f32 %v73, %v272
    %v274 = vpop.f32.mrf.mxu0
    %275 = vmatprep.mubr.f32.mxu0 0.0
    %276 = vmatmul.mubr.f32.gmra.mxu0 %v122
    %v277 = vpop.f32.mrf.mxu0
    %v278 = vadd.f32 %v73, %v277
    %v279 = vpop.f32.mrf.mxu0
    %280 = vdwg.mxu0
    %v281 = vtanh.pop %v203
    %v282 = vtanh.pop %v208
    %v283 = vtanh.pop %v213
    %v284 = vtanh.pop %v218
    %v285 = vtanh.pop %v223
    %v286 = vtanh.pop %v228
    %v287 = vtanh.pop %v233
    %v288 = vtanh.pop %v238
    %v289 = vtanh.pop %v243
    %v290 = vtanh.pop %v248
    %v291 = vtanh.pop %v253
    %v292 = vtanh.pop %v258
    %v293 = vtanh.pop %v263
    %v294 = vtanh.pop %v268
    %v295 = vtanh.pop %v273
    %v296 = vtanh.pop %v278
    %v297 = vld [vmem:[%s3] sm:$0x1]
    %v299 = vlaneseq
    %v300 = vshrl.u32 %v299, 7
    %v301 = vsub.s32 0, %v300
    %v302 = vrot.slane %v297, %v301
    %v304 = vmul.f32 %v281, %v302
    %v305 = vmul.f32 %v282, %v302
    %v306 = vmul.f32 %v283, %v302
    %v307 = vmul.f32 %v284, %v302
    %v308 = vmul.f32 %v285, %v302
    %v309 = vmul.f32 %v286, %v302
    %v310 = vmul.f32 %v287, %v302
    %v311 = vmul.f32 %v288, %v302
    %v312 = vmul.f32 %v289, %v302
    %v313 = vmul.f32 %v290, %v302
    %v314 = vmul.f32 %v291, %v302
    %v315 = vmul.f32 %v292, %v302
    %v316 = vmul.f32 %v293, %v302
    %v317 = vmul.f32 %v294, %v302
    %v318 = vmul.f32 %v295, %v302
    %v319 = vmul.f32 %v296, %v302
    %v320 = vsel %vm75, %v304, 0.0
    %321 = vadd.xlane.f32.xlu0 %v320
    %v322 = vpop.xlane.xlu0 %321
    %v323 = vsel %vm75, %v305, 0.0
    %324 = vadd.xlane.f32.xlu0 %v323
    %v325 = vpop.xlane.xlu0 %324
    %v326 = vsel %vm75, %v306, 0.0
    %327 = vadd.xlane.f32.xlu0 %v326
    %v328 = vpop.xlane.xlu0 %327
    %v329 = vsel %vm75, %v307, 0.0
    %330 = vadd.xlane.f32.xlu0 %v329
    %v331 = vpop.xlane.xlu0 %330
    %v332 = vsel %vm75, %v308, 0.0
    %333 = vadd.xlane.f32.xlu0 %v332
    %v334 = vpop.xlane.xlu0 %333
    %v335 = vsel %vm75, %v309, 0.0
    %336 = vadd.xlane.f32.xlu0 %v335
    %v337 = vpop.xlane.xlu0 %336
    %v338 = vsel %vm75, %v310, 0.0
    %339 = vadd.xlane.f32.xlu0 %v338
    %v340 = vpop.xlane.xlu0 %339
    %v341 = vsel %vm75, %v311, 0.0
    %342 = vadd.xlane.f32.xlu0 %v341
    %v343 = vpop.xlane.xlu0 %342
    %v344 = vsel %vm75, %v312, 0.0
    %345 = vadd.xlane.f32.xlu0 %v344
    %v346 = vpop.xlane.xlu0 %345
    %v347 = vsel %vm75, %v313, 0.0
    %348 = vadd.xlane.f32.xlu0 %v347
    %v349 = vpop.xlane.xlu0 %348
    %v350 = vsel %vm75, %v314, 0.0
    %351 = vadd.xlane.f32.xlu0 %v350
    %v352 = vpop.xlane.xlu0 %351
    %v353 = vsel %vm75, %v315, 0.0
    %354 = vadd.xlane.f32.xlu0 %v353
    %v355 = vpop.xlane.xlu0 %354
    %v356 = vsel %vm75, %v316, 0.0
    %357 = vadd.xlane.f32.xlu0 %v356
    %v358 = vpop.xlane.xlu0 %357
    %v359 = vsel %vm75, %v317, 0.0
    %360 = vadd.xlane.f32.xlu0 %v359
    %v361 = vpop.xlane.xlu0 %360
    %v362 = vsel %vm75, %v318, 0.0
    %363 = vadd.xlane.f32.xlu0 %v362
    %v364 = vpop.xlane.xlu0 %363
    %v365 = vsel %vm75, %v319, 0.0
    %366 = vadd.xlane.f32.xlu0 %v365
    %v367 = vpop.xlane.xlu0 %366
    %v384 = vlaneseq
    %v385 = vand.u32 %v384, 127
    %v386 = vlaneseq
    %v387 = vshrl.u32 %v386, 7
    %v388 = vsub.s32 %v385, %v387
    %v389 = vrot.slane %v322, %v388
    %v390 = vlaneseq
    %v391 = vshrl.u32 %v390, 7
    %v392 = vsub.s32 %v385, %v391
    %v393 = vrot.slane %v325, %v392
    %v394 = vlaneseq
    %v395 = vshrl.u32 %v394, 7
    %v396 = vsub.s32 %v385, %v395
    %v397 = vrot.slane %v328, %v396
    %v398 = vlaneseq
    %v399 = vshrl.u32 %v398, 7
    %v400 = vsub.s32 %v385, %v399
    %v401 = vrot.slane %v331, %v400
    %v402 = vlaneseq
    %v403 = vshrl.u32 %v402, 7
    %v404 = vsub.s32 %v385, %v403
    %v405 = vrot.slane %v334, %v404
    %v406 = vlaneseq
    %v407 = vshrl.u32 %v406, 7
    %v408 = vsub.s32 %v385, %v407
    %v409 = vrot.slane %v337, %v408
    %v410 = vlaneseq
    %v411 = vshrl.u32 %v410, 7
    %v412 = vsub.s32 %v385, %v411
    %v413 = vrot.slane %v340, %v412
    %v414 = vlaneseq
    %v415 = vshrl.u32 %v414, 7
    %v416 = vsub.s32 %v385, %v415
    %v417 = vrot.slane %v343, %v416
    %v418 = vlaneseq
    %v419 = vshrl.u32 %v418, 7
    %v420 = vsub.s32 %v385, %v419
    %v421 = vrot.slane %v346, %v420
    %v422 = vlaneseq
    %v423 = vshrl.u32 %v422, 7
    %v424 = vsub.s32 %v385, %v423
    %v425 = vrot.slane %v349, %v424
    %v426 = vlaneseq
    %v427 = vshrl.u32 %v426, 7
    %v428 = vsub.s32 %v385, %v427
    %v429 = vrot.slane %v352, %v428
    %v430 = vlaneseq
    %v431 = vshrl.u32 %v430, 7
    %v432 = vsub.s32 %v385, %v431
    %v433 = vrot.slane %v355, %v432
    %v434 = vlaneseq
    %v435 = vshrl.u32 %v434, 7
    %v436 = vsub.s32 %v385, %v435
    %v437 = vrot.slane %v358, %v436
    %v438 = vlaneseq
    %v439 = vshrl.u32 %v438, 7
    %v440 = vsub.s32 %v385, %v439
    %v441 = vrot.slane %v361, %v440
    %v442 = vlaneseq
    %v443 = vshrl.u32 %v442, 7
    %v444 = vsub.s32 %v385, %v443
    %v445 = vrot.slane %v364, %v444
    %v446 = vlaneseq
    %v447 = vshrl.u32 %v446, 7
    %v448 = vsub.s32 %v385, %v447
    %v449 = vrot.slane %v367, %v448
    %vm450 = vcmask 1041409
    %v451 = vsel %vm450, %v393, %v389
    %vm452 = vcmask 1042434
    %v453 = vsel %vm452, %v397, %v451
    %vm454 = vcmask 1043459
    %v455 = vsel %vm454, %v401, %v453
    %vm456 = vcmask 1044484
    %v457 = vsel %vm456, %v405, %v455
    %vm458 = vcmask 1045509
    %v459 = vsel %vm458, %v409, %v457
    %vm460 = vcmask 1046534
    %v461 = vsel %vm460, %v413, %v459
    %vm462 = vcmask 1047559
    %v463 = vsel %vm462, %v417, %v461
    %v464 = vsel %vm450, %v425, %v421
    %v465 = vsel %vm452, %v429, %v464
    %v466 = vsel %vm454, %v433, %v465
    %v467 = vsel %vm456, %v437, %v466
    %v468 = vsel %vm458, %v441, %v467
    %v469 = vsel %vm460, %v445, %v468
    %v470 = vsel %vm462, %v449, %v469
    %vm473 = vcmask 64512
    %v474 = vsel %vm473, %v463, -inf
    %475 = vmax.xlane.f32.xlu0 %v474
    %v476 = vpop.xlane.xlu0 %475
    %v477 = vsel %vm473, %v470, -inf
    %478 = vmax.xlane.f32.xlu0 %v477
    %v479 = vpop.xlane.xlu0 %478
    %v482 = vlaneseq
    %v483 = vshrl.u32 %v482, 7
    %v484 = vsub.s32 0, %v483
    %v485 = vrot.slane %v476, %v484
    %v486 = vlaneseq
    %v487 = vshrl.u32 %v486, 7
    %v488 = vsub.s32 1, %v487
    %v489 = vrot.slane %v476, %v488
    %v490 = vlaneseq
    %v491 = vshrl.u32 %v490, 7
    %v492 = vsub.s32 2, %v491
    %v493 = vrot.slane %v476, %v492
    %v494 = vlaneseq
    %v495 = vshrl.u32 %v494, 7
    %v496 = vsub.s32 3, %v495
    %v497 = vrot.slane %v476, %v496
    %v498 = vlaneseq
    %v499 = vshrl.u32 %v498, 7
    %v500 = vsub.s32 4, %v499
    %v501 = vrot.slane %v476, %v500
    %v502 = vlaneseq
    %v503 = vshrl.u32 %v502, 7
    %v504 = vsub.s32 5, %v503
    %v505 = vrot.slane %v476, %v504
    %v506 = vlaneseq
    %v507 = vshrl.u32 %v506, 7
    %v508 = vsub.s32 6, %v507
    %v509 = vrot.slane %v476, %v508
    %v510 = vlaneseq
    %v511 = vshrl.u32 %v510, 7
    %v512 = vsub.s32 7, %v511
    %v513 = vrot.slane %v476, %v512
    %v514 = vlaneseq
    %v515 = vshrl.u32 %v514, 7
    %v516 = vsub.s32 0, %v515
    %v517 = vrot.slane %v479, %v516
    %v518 = vlaneseq
    %v519 = vshrl.u32 %v518, 7
    %v520 = vsub.s32 1, %v519
    %v521 = vrot.slane %v479, %v520
    %v522 = vlaneseq
    %v523 = vshrl.u32 %v522, 7
    %v524 = vsub.s32 2, %v523
    %v525 = vrot.slane %v479, %v524
    %v526 = vlaneseq
    %v527 = vshrl.u32 %v526, 7
    %v528 = vsub.s32 3, %v527
    %v529 = vrot.slane %v479, %v528
    %v530 = vlaneseq
    %v531 = vshrl.u32 %v530, 7
    %v532 = vsub.s32 4, %v531
    %v533 = vrot.slane %v479, %v532
    %v534 = vlaneseq
    %v535 = vshrl.u32 %v534, 7
    %v536 = vsub.s32 5, %v535
    %v537 = vrot.slane %v479, %v536
    %v538 = vlaneseq
    %v539 = vshrl.u32 %v538, 7
    %v540 = vsub.s32 6, %v539
    %v541 = vrot.slane %v479, %v540
    %v542 = vlaneseq
    %v543 = vshrl.u32 %v542, 7
    %v544 = vsub.s32 7, %v543
    %v545 = vrot.slane %v479, %v544
    %v562 = vsub.f32 %v322, %v485
    %v563 = vsub.f32 %v325, %v489
    %v564 = vsub.f32 %v328, %v493
    %v565 = vsub.f32 %v331, %v497
    %v566 = vsub.f32 %v334, %v501
    %v567 = vsub.f32 %v337, %v505
    %v568 = vsub.f32 %v340, %v509
    %v569 = vsub.f32 %v343, %v513
    %v570 = vsub.f32 %v346, %v517
    %v571 = vsub.f32 %v349, %v521
    %v572 = vsub.f32 %v352, %v525
    %v573 = vsub.f32 %v355, %v529
    %v574 = vsub.f32 %v358, %v533
    %v575 = vsub.f32 %v361, %v537
    %v576 = vsub.f32 %v364, %v541
    %v577 = vsub.f32 %v367, %v545
    %v578 = vmul.f32 %v562, 1.442695
    %v579 = vpow.pop %v578
    %v580 = vmul.f32 %v563, 1.442695
    %v581 = vpow.pop %v580
    %v582 = vmul.f32 %v564, 1.442695
    %v583 = vpow.pop %v582
    %v584 = vmul.f32 %v565, 1.442695
    %v585 = vpow.pop %v584
    %v586 = vmul.f32 %v566, 1.442695
    %v587 = vpow.pop %v586
    %v588 = vmul.f32 %v567, 1.442695
    %v589 = vpow.pop %v588
    %v590 = vmul.f32 %v568, 1.442695
    %v591 = vpow.pop %v590
    %v592 = vmul.f32 %v569, 1.442695
    %v593 = vpow.pop %v592
    %v594 = vmul.f32 %v570, 1.442695
    %v595 = vpow.pop %v594
    %v596 = vmul.f32 %v571, 1.442695
    %v597 = vpow.pop %v596
    %v598 = vmul.f32 %v572, 1.442695
    %v599 = vpow.pop %v598
    %v600 = vmul.f32 %v573, 1.442695
    %v601 = vpow.pop %v600
    %v602 = vmul.f32 %v574, 1.442695
    %v603 = vpow.pop %v602
    %v604 = vmul.f32 %v575, 1.442695
    %v605 = vpow.pop %v604
    %v606 = vmul.f32 %v576, 1.442695
    %v607 = vpow.pop %v606
    %v608 = vmul.f32 %v577, 1.442695
    %v609 = vpow.pop %v608
    %626 = vset.pattern.permute.xlu0 0
    %627 = vperm.xlu0 %626, %v579
    %v628 = vpop.permute.xlu0 %627
    %629 = vset.pattern.permute.xlu0 0
    %630 = vperm.xlu0 %629, %v581
    %v631 = vpop.permute.xlu0 %630
    %632 = vset.pattern.permute.xlu0 0
    %633 = vperm.xlu0 %632, %v583
    %v634 = vpop.permute.xlu0 %633
    %635 = vset.pattern.permute.xlu0 0
    %636 = vperm.xlu0 %635, %v585
    %v637 = vpop.permute.xlu0 %636
    %638 = vset.pattern.permute.xlu0 0
    %639 = vperm.xlu0 %638, %v587
    %v640 = vpop.permute.xlu0 %639
    %641 = vset.pattern.permute.xlu0 0
    %642 = vperm.xlu0 %641, %v589
    %v643 = vpop.permute.xlu0 %642
    %644 = vset.pattern.permute.xlu0 0
    %645 = vperm.xlu0 %644, %v591
    %v646 = vpop.permute.xlu0 %645
    %647 = vset.pattern.permute.xlu0 0
    %648 = vperm.xlu0 %647, %v593
    %v649 = vpop.permute.xlu0 %648
    %650 = vset.pattern.permute.xlu0 0
    %651 = vperm.xlu0 %650, %v595
    %v652 = vpop.permute.xlu0 %651
    %653 = vset.pattern.permute.xlu0 0
    %654 = vperm.xlu0 %653, %v597
    %v655 = vpop.permute.xlu0 %654
    %656 = vset.pattern.permute.xlu0 0
    %657 = vperm.xlu0 %656, %v599
    %v658 = vpop.permute.xlu0 %657
    %659 = vset.pattern.permute.xlu0 0
    %660 = vperm.xlu0 %659, %v601
    %v661 = vpop.permute.xlu0 %660
    %662 = vset.pattern.permute.xlu0 0
    %663 = vperm.xlu0 %662, %v603
    %v664 = vpop.permute.xlu0 %663
    %665 = vset.pattern.permute.xlu0 0
    %666 = vperm.xlu0 %665, %v605
    %v667 = vpop.permute.xlu0 %666
    %668 = vset.pattern.permute.xlu0 0
    %669 = vperm.xlu0 %668, %v607
    %v670 = vpop.permute.xlu0 %669
    %671 = vset.pattern.permute.xlu0 0
    %672 = vperm.xlu0 %671, %v609
    %v673 = vpop.permute.xlu0 %672
    %v674 = vlaneseq
    %v675 = vshrl.u32 %v674, 7
    %v676 = vsub.s32 %v385, %v675
    %v677 = vrot.slane %v628, %v676
    %v678 = vlaneseq
    %v679 = vshrl.u32 %v678, 7
    %v680 = vsub.s32 %v385, %v679
    %v681 = vrot.slane %v631, %v680
    %v682 = vlaneseq
    %v683 = vshrl.u32 %v682, 7
    %v684 = vsub.s32 %v385, %v683
    %v685 = vrot.slane %v634, %v684
    %v686 = vlaneseq
    %v687 = vshrl.u32 %v686, 7
    %v688 = vsub.s32 %v385, %v687
    %v689 = vrot.slane %v637, %v688
    %v690 = vlaneseq
    %v691 = vshrl.u32 %v690, 7
    %v692 = vsub.s32 %v385, %v691
    %v693 = vrot.slane %v640, %v692
    %v694 = vlaneseq
    %v695 = vshrl.u32 %v694, 7
    %v696 = vsub.s32 %v385, %v695
    %v697 = vrot.slane %v643, %v696
    %v698 = vlaneseq
    %v699 = vshrl.u32 %v698, 7
    %v700 = vsub.s32 %v385, %v699
    %v701 = vrot.slane %v646, %v700
    %v702 = vlaneseq
    %v703 = vshrl.u32 %v702, 7
    %v704 = vsub.s32 %v385, %v703
    %v705 = vrot.slane %v649, %v704
    %v706 = vlaneseq
    %v707 = vshrl.u32 %v706, 7
    %v708 = vsub.s32 %v385, %v707
    %v709 = vrot.slane %v652, %v708
    %v710 = vlaneseq
    %v711 = vshrl.u32 %v710, 7
    %v712 = vsub.s32 %v385, %v711
    %v713 = vrot.slane %v655, %v712
    %v714 = vlaneseq
    %v715 = vshrl.u32 %v714, 7
    %v716 = vsub.s32 %v385, %v715
    %v717 = vrot.slane %v658, %v716
    %v718 = vlaneseq
    %v719 = vshrl.u32 %v718, 7
    %v720 = vsub.s32 %v385, %v719
    %v721 = vrot.slane %v661, %v720
    %v722 = vlaneseq
    %v723 = vshrl.u32 %v722, 7
    %v724 = vsub.s32 %v385, %v723
    %v725 = vrot.slane %v664, %v724
    %v726 = vlaneseq
    %v727 = vshrl.u32 %v726, 7
    %v728 = vsub.s32 %v385, %v727
    %v729 = vrot.slane %v667, %v728
    %v730 = vlaneseq
    %v731 = vshrl.u32 %v730, 7
    %v732 = vsub.s32 %v385, %v731
    %v733 = vrot.slane %v670, %v732
    %v734 = vlaneseq
    %v735 = vshrl.u32 %v734, 7
    %v736 = vsub.s32 %v385, %v735
    %v737 = vrot.slane %v673, %v736
    %v738 = vsel %vm450, %v681, %v677
    %v739 = vsel %vm452, %v685, %v738
    %v740 = vsel %vm454, %v689, %v739
    %v741 = vsel %vm456, %v693, %v740
    %v742 = vsel %vm458, %v697, %v741
    %v743 = vsel %vm460, %v701, %v742
    %v744 = vsel %vm462, %v705, %v743
    %v745 = vsel %vm450, %v713, %v709
    %v746 = vsel %vm452, %v717, %v745
    %v747 = vsel %vm454, %v721, %v746
    %v748 = vsel %vm456, %v725, %v747
    %v749 = vsel %vm458, %v729, %v748
    %v750 = vsel %vm460, %v733, %v749
    %v751 = vsel %vm462, %v737, %v750
    %v754 = vsel %vm473, %v744, 0.0
    %755 = vadd.xlane.f32.xlu0 %v754
    %v756 = vpop.xlane.xlu0 %755
    %v757 = vsel %vm473, %v751, 0.0
    %758 = vadd.xlane.f32.xlu0 %v757
    %v759 = vpop.xlane.xlu0 %758
    %v762 = vlaneseq
    %v763 = vshrl.u32 %v762, 7
    %v764 = vsub.s32 0, %v763
    %v765 = vrot.slane %v756, %v764
    %v766 = vlaneseq
    %v767 = vshrl.u32 %v766, 7
    %v768 = vsub.s32 1, %v767
    %v769 = vrot.slane %v756, %v768
    %v770 = vlaneseq
    %v771 = vshrl.u32 %v770, 7
    %v772 = vsub.s32 2, %v771
    %v773 = vrot.slane %v756, %v772
    %v774 = vlaneseq
    %v775 = vshrl.u32 %v774, 7
    %v776 = vsub.s32 3, %v775
    %v777 = vrot.slane %v756, %v776
    %v778 = vlaneseq
    %v779 = vshrl.u32 %v778, 7
    %v780 = vsub.s32 4, %v779
    %v781 = vrot.slane %v756, %v780
    %v782 = vlaneseq
    %v783 = vshrl.u32 %v782, 7
    %v784 = vsub.s32 5, %v783
    %v785 = vrot.slane %v756, %v784
    %v786 = vlaneseq
    %v787 = vshrl.u32 %v786, 7
    %v788 = vsub.s32 6, %v787
    %v789 = vrot.slane %v756, %v788
    %v790 = vlaneseq
    %v791 = vshrl.u32 %v790, 7
    %v792 = vsub.s32 7, %v791
    %v793 = vrot.slane %v756, %v792
    %v794 = vlaneseq
    %v795 = vshrl.u32 %v794, 7
    %v796 = vsub.s32 0, %v795
    %v797 = vrot.slane %v759, %v796
    %v798 = vlaneseq
    %v799 = vshrl.u32 %v798, 7
    %v800 = vsub.s32 1, %v799
    %v801 = vrot.slane %v759, %v800
    %v802 = vlaneseq
    %v803 = vshrl.u32 %v802, 7
    %v804 = vsub.s32 2, %v803
    %v805 = vrot.slane %v759, %v804
    %v806 = vlaneseq
    %v807 = vshrl.u32 %v806, 7
    %v808 = vsub.s32 3, %v807
    %v809 = vrot.slane %v759, %v808
    %v810 = vlaneseq
    %v811 = vshrl.u32 %v810, 7
    %v812 = vsub.s32 4, %v811
    %v813 = vrot.slane %v759, %v812
    %v814 = vlaneseq
    %v815 = vshrl.u32 %v814, 7
    %v816 = vsub.s32 5, %v815
    %v817 = vrot.slane %v759, %v816
    %v818 = vlaneseq
    %v819 = vshrl.u32 %v818, 7
    %v820 = vsub.s32 6, %v819
    %v821 = vrot.slane %v759, %v820
    %v822 = vlaneseq
    %v823 = vshrl.u32 %v822, 7
    %v824 = vsub.s32 7, %v823
    %v825 = vrot.slane %v759, %v824
    %v842 = vrcp.pop %v765
    %v843 = vmul.f32 %v579, %v842
    %v844 = vrcp.pop %v769
    %v845 = vmul.f32 %v581, %v844
    %v846 = vrcp.pop %v773
    %v847 = vmul.f32 %v583, %v846
    %v848 = vrcp.pop %v777
    %v849 = vmul.f32 %v585, %v848
    %v850 = vrcp.pop %v781
    %v851 = vmul.f32 %v587, %v850
    %v852 = vrcp.pop %v785
    %v853 = vmul.f32 %v589, %v852
    %v854 = vrcp.pop %v789
    %v855 = vmul.f32 %v591, %v854
    %v856 = vrcp.pop %v793
    %v857 = vmul.f32 %v593, %v856
    %v858 = vrcp.pop %v797
    %v859 = vmul.f32 %v595, %v858
    %v860 = vrcp.pop %v801
    %v861 = vmul.f32 %v597, %v860
    %v862 = vrcp.pop %v805
    %v863 = vmul.f32 %v599, %v862
    %v864 = vrcp.pop %v809
    %v865 = vmul.f32 %v601, %v864
    %v866 = vrcp.pop %v813
    %v867 = vmul.f32 %v603, %v866
    %v868 = vrcp.pop %v817
    %v869 = vmul.f32 %v605, %v868
    %v870 = vrcp.pop %v821
    %v871 = vmul.f32 %v607, %v870
    %v872 = vrcp.pop %v825
    %v873 = vmul.f32 %v609, %v872
    %890 = vset.pattern.permute.xlu0 0
    %891 = vperm.xlu0 %890, %v843
    %v892 = vpop.permute.xlu0 %891
    %893 = vset.pattern.permute.xlu0 0
    %894 = vperm.xlu0 %893, %v845
    %v895 = vpop.permute.xlu0 %894
    %896 = vset.pattern.permute.xlu0 0
    %897 = vperm.xlu0 %896, %v847
    %v898 = vpop.permute.xlu0 %897
    %899 = vset.pattern.permute.xlu0 0
    %900 = vperm.xlu0 %899, %v849
    %v901 = vpop.permute.xlu0 %900
    %902 = vset.pattern.permute.xlu0 0
    %903 = vperm.xlu0 %902, %v851
    %v904 = vpop.permute.xlu0 %903
    %905 = vset.pattern.permute.xlu0 0
    %906 = vperm.xlu0 %905, %v853
    %v907 = vpop.permute.xlu0 %906
    %908 = vset.pattern.permute.xlu0 0
    %909 = vperm.xlu0 %908, %v855
    %v910 = vpop.permute.xlu0 %909
    %911 = vset.pattern.permute.xlu0 0
    %912 = vperm.xlu0 %911, %v857
    %v913 = vpop.permute.xlu0 %912
    %914 = vset.pattern.permute.xlu0 0
    %915 = vperm.xlu0 %914, %v859
    %v916 = vpop.permute.xlu0 %915
    %917 = vset.pattern.permute.xlu0 0
    %918 = vperm.xlu0 %917, %v861
    %v919 = vpop.permute.xlu0 %918
    %920 = vset.pattern.permute.xlu0 0
    %921 = vperm.xlu0 %920, %v863
    %v922 = vpop.permute.xlu0 %921
    %923 = vset.pattern.permute.xlu0 0
    %924 = vperm.xlu0 %923, %v865
    %v925 = vpop.permute.xlu0 %924
    %926 = vset.pattern.permute.xlu0 0
    %927 = vperm.xlu0 %926, %v867
    %v928 = vpop.permute.xlu0 %927
    %929 = vset.pattern.permute.xlu0 0
    %930 = vperm.xlu0 %929, %v869
    %v931 = vpop.permute.xlu0 %930
    %932 = vset.pattern.permute.xlu0 0
    %933 = vperm.xlu0 %932, %v871
    %v934 = vpop.permute.xlu0 %933
    %935 = vset.pattern.permute.xlu0 0
    %936 = vperm.xlu0 %935, %v873
    %v937 = vpop.permute.xlu0 %936
    %v938 = vlaneseq
    %v939 = vshrl.u32 %v938, 7
    %v940 = vsub.s32 %v385, %v939
    %v941 = vrot.slane %v892, %v940
    %v942 = vlaneseq
    %v943 = vshrl.u32 %v942, 7
    %v944 = vsub.s32 %v385, %v943
    %v945 = vrot.slane %v895, %v944
    %v946 = vlaneseq
    %v947 = vshrl.u32 %v946, 7
    %v948 = vsub.s32 %v385, %v947
    %v949 = vrot.slane %v898, %v948
    %v950 = vlaneseq
    %v951 = vshrl.u32 %v950, 7
    %v952 = vsub.s32 %v385, %v951
    %v953 = vrot.slane %v901, %v952
    %v954 = vlaneseq
    %v955 = vshrl.u32 %v954, 7
    %v956 = vsub.s32 %v385, %v955
    %v957 = vrot.slane %v904, %v956
    %v958 = vlaneseq
    %v959 = vshrl.u32 %v958, 7
    %v960 = vsub.s32 %v385, %v959
    %v961 = vrot.slane %v907, %v960
    %v962 = vlaneseq
    %v963 = vshrl.u32 %v962, 7
    %v964 = vsub.s32 %v385, %v963
    %v965 = vrot.slane %v910, %v964
    %v966 = vlaneseq
    %v967 = vshrl.u32 %v966, 7
    %v968 = vsub.s32 %v385, %v967
    %v969 = vrot.slane %v913, %v968
    %v970 = vlaneseq
    %v971 = vshrl.u32 %v970, 7
    %v972 = vsub.s32 %v385, %v971
    %v973 = vrot.slane %v916, %v972
    %v974 = vlaneseq
    %v975 = vshrl.u32 %v974, 7
    %v976 = vsub.s32 %v385, %v975
    %v977 = vrot.slane %v919, %v976
    %v978 = vlaneseq
    %v979 = vshrl.u32 %v978, 7
    %v980 = vsub.s32 %v385, %v979
    %v981 = vrot.slane %v922, %v980
    %v982 = vlaneseq
    %v983 = vshrl.u32 %v982, 7
    %v984 = vsub.s32 %v385, %v983
    %v985 = vrot.slane %v925, %v984
    %v986 = vlaneseq
    %v987 = vshrl.u32 %v986, 7
    %v988 = vsub.s32 %v385, %v987
    %v989 = vrot.slane %v928, %v988
    %v990 = vlaneseq
    %v991 = vshrl.u32 %v990, 7
    %v992 = vsub.s32 %v385, %v991
    %v993 = vrot.slane %v931, %v992
    %v994 = vlaneseq
    %v995 = vshrl.u32 %v994, 7
    %v996 = vsub.s32 %v385, %v995
    %v997 = vrot.slane %v934, %v996
    %v998 = vlaneseq
    %v999 = vshrl.u32 %v998, 7
    %v1000 = vsub.s32 %v385, %v999
    %v1001 = vrot.slane %v937, %v1000
    %v1002 = vsel %vm450, %v945, %v941
    %v1003 = vsel %vm452, %v949, %v1002
    %v1004 = vsel %vm454, %v953, %v1003
    %v1005 = vsel %vm456, %v957, %v1004
    %v1006 = vsel %vm458, %v961, %v1005
    %v1007 = vsel %vm460, %v965, %v1006
    %v1008 = vsel %vm462, %v969, %v1007
    %v1009 = vsel %vm450, %v977, %v973
    %v1010 = vsel %vm452, %v981, %v1009
    %v1011 = vsel %vm454, %v985, %v1010
    %v1012 = vsel %vm456, %v989, %v1011
    %v1013 = vsel %vm458, %v993, %v1012
    %v1014 = vsel %vm460, %v997, %v1013
    %v1015 = vsel %vm462, %v1001, %v1014
    %1018 = vst.msk [vmem:[%s5] sm:$0xff] %vm473, %v1008
    %1019 = vst.msk [vmem:[%s5 + $0x8] sm:$0xff] %vm473, %v1015
    %v1036 = vmul.f32 %v48, %v892
    %v1037 = vmul.f32 %v49, %v895
    %v1038 = vmul.f32 %v50, %v898
    %v1039 = vmul.f32 %v51, %v901
    %v1040 = vmul.f32 %v52, %v904
    %v1041 = vmul.f32 %v53, %v907
    %v1042 = vmul.f32 %v54, %v910
    %v1043 = vmul.f32 %v55, %v913
    %v1044 = vmul.f32 %v56, %v916
    %v1045 = vmul.f32 %v57, %v919
    %v1046 = vmul.f32 %v58, %v922
    %v1047 = vmul.f32 %v59, %v925
    %v1048 = vmul.f32 %v60, %v928
    %v1049 = vmul.f32 %v61, %v931
    %v1050 = vmul.f32 %v62, %v934
    %v1051 = vmul.f32 %v63, %v937
    %v1052 = vsel %vm75, %v1036, 0.0
    %v1053 = vrot.slane %v1052, 4
    %v1054 = vadd.f32 %v1052, %v1053
    %v1055 = vrot.slane %v1054, 2
    %v1056 = vadd.f32 %v1054, %v1055
    %v1057 = vrot.slane %v1056, 1
    %v1058 = vadd.f32 %v1056, %v1057
    %v1059 = vsel %vm75, %v1037, 0.0
    %v1060 = vrot.slane %v1059, 4
    %v1061 = vadd.f32 %v1059, %v1060
    %v1062 = vrot.slane %v1061, 2
    %v1063 = vadd.f32 %v1061, %v1062
    %v1064 = vrot.slane %v1063, 1
    %v1065 = vadd.f32 %v1063, %v1064
    %v1066 = vsel %vm75, %v1038, 0.0
    %v1067 = vrot.slane %v1066, 4
    %v1068 = vadd.f32 %v1066, %v1067
    %v1069 = vrot.slane %v1068, 2
    %v1070 = vadd.f32 %v1068, %v1069
    %v1071 = vrot.slane %v1070, 1
    %v1072 = vadd.f32 %v1070, %v1071
    %v1073 = vsel %vm75, %v1039, 0.0
    %v1074 = vrot.slane %v1073, 4
    %v1075 = vadd.f32 %v1073, %v1074
    %v1076 = vrot.slane %v1075, 2
    %v1077 = vadd.f32 %v1075, %v1076
    %v1078 = vrot.slane %v1077, 1
    %v1079 = vadd.f32 %v1077, %v1078
    %v1080 = vsel %vm75, %v1040, 0.0
    %v1081 = vrot.slane %v1080, 4
    %v1082 = vadd.f32 %v1080, %v1081
    %v1083 = vrot.slane %v1082, 2
    %v1084 = vadd.f32 %v1082, %v1083
    %v1085 = vrot.slane %v1084, 1
    %v1086 = vadd.f32 %v1084, %v1085
    %v1087 = vsel %vm75, %v1041, 0.0
    %v1088 = vrot.slane %v1087, 4
    %v1089 = vadd.f32 %v1087, %v1088
    %v1090 = vrot.slane %v1089, 2
    %v1091 = vadd.f32 %v1089, %v1090
    %v1092 = vrot.slane %v1091, 1
    %v1093 = vadd.f32 %v1091, %v1092
    %v1094 = vsel %vm75, %v1042, 0.0
    %v1095 = vrot.slane %v1094, 4
    %v1096 = vadd.f32 %v1094, %v1095
    %v1097 = vrot.slane %v1096, 2
    %v1098 = vadd.f32 %v1096, %v1097
    %v1099 = vrot.slane %v1098, 1
    %v1100 = vadd.f32 %v1098, %v1099
    %v1101 = vsel %vm75, %v1043, 0.0
    %v1102 = vrot.slane %v1101, 4
    %v1103 = vadd.f32 %v1101, %v1102
    %v1104 = vrot.slane %v1103, 2
    %v1105 = vadd.f32 %v1103, %v1104
    %v1106 = vrot.slane %v1105, 1
    %v1107 = vadd.f32 %v1105, %v1106
    %v1108 = vsel %vm75, %v1044, 0.0
    %v1109 = vrot.slane %v1108, 4
    %v1110 = vadd.f32 %v1108, %v1109
    %v1111 = vrot.slane %v1110, 2
    %v1112 = vadd.f32 %v1110, %v1111
    %v1113 = vrot.slane %v1112, 1
    %v1114 = vadd.f32 %v1112, %v1113
    %v1115 = vsel %vm75, %v1045, 0.0
    %v1116 = vrot.slane %v1115, 4
    %v1117 = vadd.f32 %v1115, %v1116
    %v1118 = vrot.slane %v1117, 2
    %v1119 = vadd.f32 %v1117, %v1118
    %v1120 = vrot.slane %v1119, 1
    %v1121 = vadd.f32 %v1119, %v1120
    %v1122 = vsel %vm75, %v1046, 0.0
    %v1123 = vrot.slane %v1122, 4
    %v1124 = vadd.f32 %v1122, %v1123
    %v1125 = vrot.slane %v1124, 2
    %v1126 = vadd.f32 %v1124, %v1125
    %v1127 = vrot.slane %v1126, 1
    %v1128 = vadd.f32 %v1126, %v1127
    %v1129 = vsel %vm75, %v1047, 0.0
    %v1130 = vrot.slane %v1129, 4
    %v1131 = vadd.f32 %v1129, %v1130
    %v1132 = vrot.slane %v1131, 2
    %v1133 = vadd.f32 %v1131, %v1132
    %v1134 = vrot.slane %v1133, 1
    %v1135 = vadd.f32 %v1133, %v1134
    %v1136 = vsel %vm75, %v1048, 0.0
    %v1137 = vrot.slane %v1136, 4
    %v1138 = vadd.f32 %v1136, %v1137
    %v1139 = vrot.slane %v1138, 2
    %v1140 = vadd.f32 %v1138, %v1139
    %v1141 = vrot.slane %v1140, 1
    %v1142 = vadd.f32 %v1140, %v1141
    %v1143 = vsel %vm75, %v1049, 0.0
    %v1144 = vrot.slane %v1143, 4
    %v1145 = vadd.f32 %v1143, %v1144
    %v1146 = vrot.slane %v1145, 2
    %v1147 = vadd.f32 %v1145, %v1146
    %v1148 = vrot.slane %v1147, 1
    %v1149 = vadd.f32 %v1147, %v1148
    %v1150 = vsel %vm75, %v1050, 0.0
    %v1151 = vrot.slane %v1150, 4
    %v1152 = vadd.f32 %v1150, %v1151
    %v1153 = vrot.slane %v1152, 2
    %v1154 = vadd.f32 %v1152, %v1153
    %v1155 = vrot.slane %v1154, 1
    %v1156 = vadd.f32 %v1154, %v1155
    %v1157 = vsel %vm75, %v1051, 0.0
    %v1158 = vrot.slane %v1157, 4
    %v1159 = vadd.f32 %v1157, %v1158
    %v1160 = vrot.slane %v1159, 2
    %v1161 = vadd.f32 %v1159, %v1160
    %v1162 = vrot.slane %v1161, 1
    %v1163 = vadd.f32 %v1161, %v1162
    %v1180 = vsel %vm450, %v1065, %v1058
    %v1181 = vsel %vm452, %v1072, %v1180
    %v1182 = vsel %vm454, %v1079, %v1181
    %v1183 = vsel %vm456, %v1086, %v1182
    %v1184 = vsel %vm458, %v1093, %v1183
    %v1185 = vsel %vm460, %v1100, %v1184
    %v1186 = vsel %vm462, %v1107, %v1185
    %v1187 = vsel %vm450, %v1121, %v1114
    %v1188 = vsel %vm452, %v1128, %v1187
    %v1189 = vsel %vm454, %v1135, %v1188
    %v1190 = vsel %vm456, %v1142, %v1189
    %v1191 = vsel %vm458, %v1149, %v1190
    %v1192 = vsel %vm460, %v1156, %v1191
    %v1193 = vsel %vm462, %v1163, %v1192
    %1196 = vst.msk [vmem:[#allocation7] sm:$0xff] %vm75, %v1186
    %1197 = vst.msk [vmem:[#allocation7 + $0x8] sm:$0xff] %vm75, %v1193
    // Predicated region
    $region26: #{tpu_custom_call.1} parent=1 // pred_check
      _
    $region27: #{tpu_custom_call.1} parent=1 // pred_check_branch
      %1199 = sbr.rel (0) target = $region29
    $region28: #{tpu_custom_call.1} parent=1 // pred_region
      %s1201 = ssub.s32 256, 256
      %1202 = vsyncadd [#allocation4], %s1201
      %s1203 = sshll.u32 [#allocation7], 4
      %s1204 = int_to_ptr.vmem [resolvable:$true] %s1203
      %1209 = dma.vmem_to_hbm [thread:$0]  %s1204, 256, %s4, [#allocation4], 128, 128, 8
    $region29: #{tpu_custom_call.1} parent=1 // pred_fallthru
      _
    // Predicated region
    $region30: #{tpu_custom_call.1} parent=1 // pred_check
      _
    $region31: #{tpu_custom_call.1} parent=1 // pred_check_branch
      %1211 = sbr.rel (0) target = $region33
    $region32: #{tpu_custom_call.1} parent=1 // pred_region
      _
    $region33: #{tpu_custom_call.1} parent=1 // pred_fallthru
      _
    // Predicated region
    $region34: #{tpu_custom_call.1} parent=1 // pred_check
      _
    $region35: #{tpu_custom_call.1} parent=1 // pred_check_branch
      %1213 = sbr.rel (0) target = $region37
    $region36: #{tpu_custom_call.1} parent=1 // pred_region
      %1214 = dma.done [#allocation4], 256
    $region37: #{tpu_custom_call.1} parent=1 // pred_fallthru
      _
    // Predicated region
    $region38: #{tpu_custom_call.1} parent=1 // pred_check
      _
    $region39: #{tpu_custom_call.1} parent=1 // pred_check_branch
      %1216 = sbr.rel (0) target = $region41
    $region40: #{tpu_custom_call.1} parent=1 // pred_region
      _
    $region41: #{tpu_custom_call.1} parent=1 // pred_fallthru
      _
    %1217 = vsyncpa [#allocation3], 1
    %1218 = vsyncpa [#allocation6], 1
    %1219 = vsyncpa [#allocation4], 1

</llo_original>
